<compile_context>
chip_gen: v5e
topology: v5e:2x2
jax: 0.10.0
libtpu: 0.0.40
codegen_flags: <defaults>
</compile_context>

<pallas_src>
import numpy as np
import jax
import jax.numpy as jnp
from jax.experimental import pallas as pl
from jax.experimental.pallas import tpu as pltpu

# --- module constants (from the PyTorch script) ---
bsz = 1
dim_cate_new = 19
dim_color = 17
dim_gender = 2
dim_h = 100
dim_sleeve = 4
dim_voc = 539
num_layers = 2

# --- padded sizes for TPU lane/sublane alignment ---
H_PAD = 128                  # 100 -> 128 (one lane tile)
S_PAD = 2 * H_PAD            # fused skewed-state width: [h0 | h1]
V_PAD = 544                  # 539 -> 544 (next multiple of 8)
HEAD_PAD = 128               # 19+17+2+4 = 42 -> 128 (lane-dense fused head output)
DIM_HEADS = dim_cate_new + dim_color + dim_gender + dim_sleeve  # 42


def rnn_heads_kernel(x_ref, wih0_ref, b0_ref, b1_ref, wfused_ref,
                     whead_ref, bhead_ref, out_ref, add_ref):
    """Skewed/fused 2-layer tanh RNN (B=1) + fused linear heads, fully VMEM-resident.

    x_ref:      (T+1, V_PAD)   inputs; row T is an all-zero sentinel row
    wih0_ref:   (V_PAD, H_PAD)
    b0_ref:     (1, H_PAD)     b_ih0 + b_hh0
    b1_ref:     (1, H_PAD)     b_ih1 + b_hh1
    wfused_ref: (S_PAD, S_PAD) [[Whh0, Wih1], [0, Whh1]] in (in, out) orientation
    whead_ref:  (H_PAD, HEAD_PAD) fused head weights
    bhead_ref:  (1, HEAD_PAD)
    out_ref:    (2, H_PAD)     row 0 = h_n (layer-1 final hidden), row 1 = fused logits
    add_ref:    (T+1, S_PAD)   per-step additive terms [xproj0[t] | b1]
    """
    Text = x_ref.shape[0]          # T + 1
    T = Text - 1
    H = H_PAD

    # ---- layer-0 input projection for all timesteps: one batched MXU matmul ----
    xproj0 = (jnp.dot(x_ref[...], wih0_ref[...],
                      preferred_element_type=jnp.float32)
              + b0_ref[...])                                   # (T+1, H); row T unused

    # Stage per-step add vectors in VMEM: row t = [xproj0[t] | b1].
    add_ref[:, 0:H] = xproj0
    add_ref[:, H:S_PAD] = jnp.broadcast_to(b1_ref[...], (Text, H))

    # ---- skewed recurrence ----
    # state_t = [h0[t-1] | h1[t-2]]; one fused matmul + tanh advances both layers:
    #   tanh(state_t @ Wfused + [xproj0[t] | b1]) = [h0[t] | h1[t-1]] = state_{t+1}
    # Initial state (after implicit step 0): [h0[0] | h1[-1]] = [tanh(xproj0[0]) | 0].
    state = jnp.concatenate(
        [jnp.tanh(add_ref[0:1, 0:H]),
         jnp.zeros((1, H), jnp.float32)], axis=1)              # (1, S_PAD)

    for t in range(1, T + 1):                                  # static T -> fully unrolled
        pre = jnp.dot(state, wfused_ref[...],                  # fused weight read per step,
                      preferred_element_type=jnp.float32)      # not hoisted into vregs
        state = jnp.tanh(pre + add_ref[pl.ds(t, 1), :])

    # After step T: state = [discarded | h1[T-1]] (padded lanes are exactly 0).
    h1_final = state[:, H:S_PAD]                               # (1, H)

    # ---- fused heads + hn packed into a single (2, 128) lane-dense store ----
    yhead = (jnp.dot(h1_final, whead_ref[...],
                     preferred_element_type=jnp.float32)
             + bhead_ref[...])                                 # (1, HEAD_PAD)
    out_ref[...] = jnp.concatenate([h1_final, yhead], axis=0)


def _pad_to(a, shape):
    pads = [(0, s - d) for d, s in zip(a.shape, shape)]
    return jnp.pad(a, pads)


def make_params(key):
    """Deterministic params matching nn.RNN / nn.Linear shapes (uniform +-1/sqrt(fan))."""
    ks = jax.random.split(key, 16)
    kH = 1.0 / np.sqrt(dim_h)

    def u(k, shape, bound):
        return jax.random.uniform(k, shape, jnp.float32, -bound, bound)

    p = {}
    # RNN layer 0
    p["w_ih0"] = u(ks[0], (dim_h, dim_voc), kH)
    p["w_hh0"] = u(ks[1], (dim_h, dim_h), kH)
    p["b_ih0"] = u(ks[2], (dim_h,), kH)
    p["b_hh0"] = u(ks[3], (dim_h,), kH)
    # RNN layer 1
    p["w_ih1"] = u(ks[4], (dim_h, dim_h), kH)
    p["w_hh1"] = u(ks[5], (dim_h, dim_h), kH)
    p["b_ih1"] = u(ks[6], (dim_h,), kH)
    p["b_hh1"] = u(ks[7], (dim_h,), kH)
    # Linear heads: weight (out, dim_h), bias (out,)
    p["w_cate"] = u(ks[8], (dim_cate_new, dim_h), kH)
    p["b_cate"] = u(ks[9], (dim_cate_new,), kH)
    p["w_color"] = u(ks[10], (dim_color, dim_h), kH)
    p["b_color"] = u(ks[11], (dim_color,), kH)
    p["w_gender"] = u(ks[12], (dim_gender, dim_h), kH)
    p["b_gender"] = u(ks[13], (dim_gender,), kH)
    p["w_sleeve"] = u(ks[14], (dim_sleeve, dim_h), kH)
    p["b_sleeve"] = u(ks[15], (dim_sleeve,), kH)
    return p


def prepack_params(p):
    """One-time packing: transposes, pads, fused head weight, fused block recurrence weight."""
    wih0 = _pad_to(p["w_ih0"].T, (V_PAD, H_PAD))
    b0 = _pad_to((p["b_ih0"] + p["b_hh0"])[None, :], (1, H_PAD))
    b1 = _pad_to((p["b_ih1"] + p["b_hh1"])[None, :], (1, H_PAD))

    whh0 = _pad_to(p["w_hh0"].T, (H_PAD, H_PAD))
    wih1 = _pad_to(p["w_ih1"].T, (H_PAD, H_PAD))
    whh1 = _pad_to(p["w_hh1"].T, (H_PAD, H_PAD))
    # Block weight for the skewed fused step:  [h0 | h1] @ [[Whh0, Wih1], [0, Whh1]]
    wfused = jnp.concatenate(
        [jnp.concatenate([whh0, wih1], axis=1),
         jnp.concatenate([jnp.zeros((H_PAD, H_PAD), jnp.float32), whh1], axis=1)],
        axis=0)                                                  # (S_PAD, S_PAD)

    w_heads = jnp.concatenate(
        [p["w_cate"].T, p["w_color"].T, p["w_gender"].T, p["w_sleeve"].T], axis=1)  # (100, 42)
    b_heads = jnp.concatenate(
        [p["b_cate"], p["b_color"], p["b_gender"], p["b_sleeve"]])[None, :]         # (1, 42)
    whead = _pad_to(w_heads, (H_PAD, HEAD_PAD))
    bhead = _pad_to(b_heads, (1, HEAD_PAD))

    return dict(wih0=wih0, b0=b0, b1=b1, wfused=wfused, whead=whead, bhead=bhead)


def _forward_impl(x, packed):
    """x: (T, 1, dim_voc) f32 -> (hn2, y_cate, y_color, y_gender, y_sleeve)."""
    T = x.shape[0]
    assert x.shape == (T, bsz, dim_voc)

    # batch is 1 -> squeeze; append one zero sentinel row (consumed only by the last
    # skewed step, whose layer-0 half is discarded) and pad lanes to V_PAD.
    x2d = x[:, 0, :].astype(jnp.float32)
    x_p = jnp.pad(x2d, ((0, 1), (0, V_PAD - dim_voc)))           # (T+1, V_PAD)

    vmem = pl.BlockSpec(memory_space=pltpu.MemorySpace.VMEM)

    flops = (2 * (T + 1) * V_PAD * H_PAD          # batched input projection
             + 2 * T * S_PAD * S_PAD              # skewed recurrence
             + 2 * H_PAD * HEAD_PAD)              # fused heads
    transcendentals = H_PAD + T * S_PAD
    bytes_accessed = 4 * ((T + 1) * V_PAD + V_PAD * H_PAD + 2 * H_PAD
                          + S_PAD * S_PAD + H_PAD * HEAD_PAD + HEAD_PAD
                          + (T + 1) * S_PAD + 2 * H_PAD)

    out = pl.pallas_call(
        rnn_heads_kernel,
        out_shape=jax.ShapeDtypeStruct((2, H_PAD), jnp.float32),
        in_specs=[vmem] * 7,
        out_specs=vmem,
        scratch_shapes=[pltpu.VMEM((T + 1, S_PAD), jnp.float32)],   # staged add vectors
        cost_estimate=pl.CostEstimate(flops=flops,
                                      transcendentals=transcendentals,
                                      bytes_accessed=bytes_accessed),
    )(x_p, packed["wih0"], packed["b0"], packed["b1"],
      packed["wfused"], packed["whead"], packed["bhead"])

    hn2 = out[0:1, :dim_h]
    y = out[1:2, :]
    o = 0
    y_cate = y[:, o:o + dim_cate_new]; o += dim_cate_new
    y_color = y[:, o:o + dim_color]; o += dim_color
    y_gender = y[:, o:o + dim_gender]; o += dim_gender
    y_sleeve = y[:, o:o + dim_sleeve]
    return hn2, y_cate, y_color, y_gender, y_sleeve


forward_pallas = jax.jit(_forward_impl)


def forward_reference(x, p):
    """Pure-JAX reference replicating torch.nn.RNN(tanh, 2 layers) + Linear heads."""
    T = x.shape[0]
    h0 = jnp.zeros((bsz, dim_h), jnp.float32)
    h1 = jnp.zeros((bsz, dim_h), jnp.float32)
    for t in range(T):
        xt = x[t]
        h0 = jnp.tanh(xt @ p["w_ih0"].T + p["b_ih0"]
                      + h0 @ p["w_hh0"].T + p["b_hh0"])
        h1 = jnp.tanh(h0 @ p["w_ih1"].T + p["b_ih1"]
                      + h1 @ p["w_hh1"].T + p["b_hh1"])
    hn2 = h1
    y_cate = hn2 @ p["w_cate"].T + p["b_cate"]
    y_color = hn2 @ p["w_color"].T + p["b_color"]
    y_gender = hn2 @ p["w_gender"].T + p["b_gender"]
    y_sleeve = hn2 @ p["w_sleeve"].T + p["b_sleeve"]
    return hn2, y_cate, y_color, y_gender, y_sleeve


if __name__ == "__main__":
    key = jax.random.PRNGKey(0)
    k_param, k_x = jax.random.split(key)

    params = make_params(k_param)
    packed = prepack_params(params)          # one-time prepack (off the per-call path)

    seq_len = 8
    x = jax.random.normal(k_x, (seq_len, bsz, dim_voc), jnp.float32)

    outs = forward_pallas(x, packed)
    outs = jax.block_until_ready(outs)

    refs = forward_reference(x, params)
    for o, r in zip(outs, refs):
        np.testing.assert_allclose(np.asarray(o), np.asarray(r), rtol=1e-4, atol=1e-4)

    print("KERNEL_OK")
</pallas_src>

<mosaic_0001>
module attributes {stable_mosaic.version = 11 : i64} {
  func.func @rnn_heads_kernel(%arg0: memref<9x544xf32, #tpu.memory_space<vmem>>, %arg1: memref<544x128xf32, #tpu.memory_space<vmem>>, %arg2: memref<1x128xf32, #tpu.memory_space<vmem>>, %arg3: memref<1x128xf32, #tpu.memory_space<vmem>>, %arg4: memref<256x256xf32, #tpu.memory_space<vmem>>, %arg5: memref<128x128xf32, #tpu.memory_space<vmem>>, %arg6: memref<1x128xf32, #tpu.memory_space<vmem>>, %arg7: memref<2x128xf32, #tpu.memory_space<vmem>>, %arg8: memref<9x256xf32, #tpu.memory_space<vmem>>) attributes {dimension_semantics = [], scalar_prefetch = 0 : i64, scratch_operands = 1 : i64, tpu.core_type = #tpu.core_type<tc>} {
    %c0 = arith.constant 0 : index
    %c0_0 = arith.constant 0 : index
    %0 = vector.load %arg0[%c0, %c0_0] : memref<9x544xf32, #tpu.memory_space<vmem>>, vector<9x544xf32>
    %c0_1 = arith.constant 0 : index
    %c0_2 = arith.constant 0 : index
    %1 = vector.load %arg1[%c0_1, %c0_2] : memref<544x128xf32, #tpu.memory_space<vmem>>, vector<544x128xf32>
    %cst = arith.constant dense<0.000000e+00> : vector<9x128xf32>
    %2 = tpu.matmul %0, %1, %cst {dimension_numbers = #tpu.dot_dimension_numbers<[1], [0], [0], [1], [0, 0, 1, 1], [], []>} : vector<9x544xf32>, vector<544x128xf32>, vector<9x128xf32> -> vector<9x128xf32>
    %c0_3 = arith.constant 0 : index
    %c0_4 = arith.constant 0 : index
    %3 = vector.load %arg2[%c0_3, %c0_4] : memref<1x128xf32, #tpu.memory_space<vmem>>, vector<1x128xf32>
    %4 = vector.broadcast %3 : vector<1x128xf32> to vector<9x128xf32>
    %5 = arith.addf %2, %4 : vector<9x128xf32>
    %c0_5 = arith.constant 0 : index
    %c0_6 = arith.constant 0 : index
    %6 = vector.load %arg8[%c0_5, %c0_6] : memref<9x256xf32, #tpu.memory_space<vmem>>, vector<9x128xf32>
    tpu.vector_store %arg8[%c0_5, %c0_6], %5 {strides = array<i32>} : memref<9x256xf32, #tpu.memory_space<vmem>>, vector<9x128xf32>,
    %c0_7 = arith.constant 0 : index
    %c0_8 = arith.constant 0 : index
    %7 = vector.load %arg3[%c0_7, %c0_8] : memref<1x128xf32, #tpu.memory_space<vmem>>, vector<1x128xf32>
    %8 = vector.shape_cast %7 : vector<1x128xf32> to vector<1x128xf32>
    %9 = vector.broadcast %8 : vector<1x128xf32> to vector<9x128xf32>
    %c0_9 = arith.constant 0 : index
    %c128 = arith.constant 128 : index
    %10 = vector.load %arg8[%c0_9, %c128] : memref<9x256xf32, #tpu.memory_space<vmem>>, vector<9x128xf32>
    tpu.vector_store %arg8[%c0_9, %c128], %9 {strides = array<i32>} : memref<9x256xf32, #tpu.memory_space<vmem>>, vector<9x128xf32>,
    %c0_10 = arith.constant 0 : index
    %c0_11 = arith.constant 0 : index
    %11 = vector.load %arg8[%c0_10, %c0_11] : memref<9x256xf32, #tpu.memory_space<vmem>>, vector<1x128xf32>
    %12 = math.tanh %11 : vector<1x128xf32>
    %cst_12 = arith.constant 0.000000e+00 : f32
    %13 = vector.broadcast %cst_12 : f32 to vector<1x128xf32>
    %14 = tpu.concatenate %12, %13 in 1 : vector<1x128xf32>, vector<1x128xf32> -> vector<1x256xf32>
    %c0_13 = arith.constant 0 : index
    %c0_14 = arith.constant 0 : index
    %15 = vector.load %arg4[%c0_13, %c0_14] : memref<256x256xf32, #tpu.memory_space<vmem>>, vector<256x256xf32>
    %cst_15 = arith.constant dense<0.000000e+00> : vector<1x256xf32>
    %16 = tpu.matmul %14, %15, %cst_15 {dimension_numbers = #tpu.dot_dimension_numbers<[1], [0], [0], [1], [0, 0, 1, 1], [], []>} : vector<1x256xf32>, vector<256x256xf32>, vector<1x256xf32> -> vector<1x256xf32>
    %c1 = arith.constant 1 : index
    %c0_16 = arith.constant 0 : index
    %17 = vector.load %arg8[%c1, %c0_16] : memref<9x256xf32, #tpu.memory_space<vmem>>, vector<1x256xf32>
    %18 = arith.addf %16, %17 : vector<1x256xf32>
    %19 = math.tanh %18 : vector<1x256xf32>
    %c0_17 = arith.constant 0 : index
    %c0_18 = arith.constant 0 : index
    %20 = vector.load %arg4[%c0_17, %c0_18] : memref<256x256xf32, #tpu.memory_space<vmem>>, vector<256x256xf32>
    %cst_19 = arith.constant dense<0.000000e+00> : vector<1x256xf32>
    %21 = tpu.matmul %19, %20, %cst_19 {dimension_numbers = #tpu.dot_dimension_numbers<[1], [0], [0], [1], [0, 0, 1, 1], [], []>} : vector<1x256xf32>, vector<256x256xf32>, vector<1x256xf32> -> vector<1x256xf32>
    %c2 = arith.constant 2 : index
    %c0_20 = arith.constant 0 : index
    %22 = vector.load %arg8[%c2, %c0_20] : memref<9x256xf32, #tpu.memory_space<vmem>>, vector<1x256xf32>
    %23 = arith.addf %21, %22 : vector<1x256xf32>
    %24 = math.tanh %23 : vector<1x256xf32>
    %c0_21 = arith.constant 0 : index
    %c0_22 = arith.constant 0 : index
    %25 = vector.load %arg4[%c0_21, %c0_22] : memref<256x256xf32, #tpu.memory_space<vmem>>, vector<256x256xf32>
    %cst_23 = arith.constant dense<0.000000e+00> : vector<1x256xf32>
    %26 = tpu.matmul %24, %25, %cst_23 {dimension_numbers = #tpu.dot_dimension_numbers<[1], [0], [0], [1], [0, 0, 1, 1], [], []>} : vector<1x256xf32>, vector<256x256xf32>, vector<1x256xf32> -> vector<1x256xf32>
    %c3 = arith.constant 3 : index
    %c0_24 = arith.constant 0 : index
    %27 = vector.load %arg8[%c3, %c0_24] : memref<9x256xf32, #tpu.memory_space<vmem>>, vector<1x256xf32>
    %28 = arith.addf %26, %27 : vector<1x256xf32>
    %29 = math.tanh %28 : vector<1x256xf32>
    %c0_25 = arith.constant 0 : index
    %c0_26 = arith.constant 0 : index
    %30 = vector.load %arg4[%c0_25, %c0_26] : memref<256x256xf32, #tpu.memory_space<vmem>>, vector<256x256xf32>
    %cst_27 = arith.constant dense<0.000000e+00> : vector<1x256xf32>
    %31 = tpu.matmul %29, %30, %cst_27 {dimension_numbers = #tpu.dot_dimension_numbers<[1], [0], [0], [1], [0, 0, 1, 1], [], []>} : vector<1x256xf32>, vector<256x256xf32>, vector<1x256xf32> -> vector<1x256xf32>
    %c4 = arith.constant 4 : index
    %c0_28 = arith.constant 0 : index
    %32 = vector.load %arg8[%c4, %c0_28] : memref<9x256xf32, #tpu.memory_space<vmem>>, vector<1x256xf32>
    %33 = arith.addf %31, %32 : vector<1x256xf32>
    %34 = math.tanh %33 : vector<1x256xf32>
    %c0_29 = arith.constant 0 : index
    %c0_30 = arith.constant 0 : index
    %35 = vector.load %arg4[%c0_29, %c0_30] : memref<256x256xf32, #tpu.memory_space<vmem>>, vector<256x256xf32>
    %cst_31 = arith.constant dense<0.000000e+00> : vector<1x256xf32>
    %36 = tpu.matmul %34, %35, %cst_31 {dimension_numbers = #tpu.dot_dimension_numbers<[1], [0], [0], [1], [0, 0, 1, 1], [], []>} : vector<1x256xf32>, vector<256x256xf32>, vector<1x256xf32> -> vector<1x256xf32>
    %c5 = arith.constant 5 : index
    %c0_32 = arith.constant 0 : index
    %37 = vector.load %arg8[%c5, %c0_32] : memref<9x256xf32, #tpu.memory_space<vmem>>, vector<1x256xf32>
    %38 = arith.addf %36, %37 : vector<1x256xf32>
    %39 = math.tanh %38 : vector<1x256xf32>
    %c0_33 = arith.constant 0 : index
    %c0_34 = arith.constant 0 : index
    %40 = vector.load %arg4[%c0_33, %c0_34] : memref<256x256xf32, #tpu.memory_space<vmem>>, vector<256x256xf32>
    %cst_35 = arith.constant dense<0.000000e+00> : vector<1x256xf32>
    %41 = tpu.matmul %39, %40, %cst_35 {dimension_numbers = #tpu.dot_dimension_numbers<[1], [0], [0], [1], [0, 0, 1, 1], [], []>} : vector<1x256xf32>, vector<256x256xf32>, vector<1x256xf32> -> vector<1x256xf32>
    %c6 = arith.constant 6 : index
    %c0_36 = arith.constant 0 : index
    %42 = vector.load %arg8[%c6, %c0_36] : memref<9x256xf32, #tpu.memory_space<vmem>>, vector<1x256xf32>
    %43 = arith.addf %41, %42 : vector<1x256xf32>
    %44 = math.tanh %43 : vector<1x256xf32>
    %c0_37 = arith.constant 0 : index
    %c0_38 = arith.constant 0 : index
    %45 = vector.load %arg4[%c0_37, %c0_38] : memref<256x256xf32, #tpu.memory_space<vmem>>, vector<256x256xf32>
    %cst_39 = arith.constant dense<0.000000e+00> : vector<1x256xf32>
    %46 = tpu.matmul %44, %45, %cst_39 {dimension_numbers = #tpu.dot_dimension_numbers<[1], [0], [0], [1], [0, 0, 1, 1], [], []>} : vector<1x256xf32>, vector<256x256xf32>, vector<1x256xf32> -> vector<1x256xf32>
    %c7 = arith.constant 7 : index
    %c0_40 = arith.constant 0 : index
    %47 = vector.load %arg8[%c7, %c0_40] : memref<9x256xf32, #tpu.memory_space<vmem>>, vector<1x256xf32>
    %48 = arith.addf %46, %47 : vector<1x256xf32>
    %49 = math.tanh %48 : vector<1x256xf32>
    %c0_41 = arith.constant 0 : index
    %c0_42 = arith.constant 0 : index
    %50 = vector.load %arg4[%c0_41, %c0_42] : memref<256x256xf32, #tpu.memory_space<vmem>>, vector<256x256xf32>
    %cst_43 = arith.constant dense<0.000000e+00> : vector<1x256xf32>
    %51 = tpu.matmul %49, %50, %cst_43 {dimension_numbers = #tpu.dot_dimension_numbers<[1], [0], [0], [1], [0, 0, 1, 1], [], []>} : vector<1x256xf32>, vector<256x256xf32>, vector<1x256xf32> -> vector<1x256xf32>
    %c8 = arith.constant 8 : index
    %c0_44 = arith.constant 0 : index
    %52 = vector.load %arg8[%c8, %c0_44] : memref<9x256xf32, #tpu.memory_space<vmem>>, vector<1x256xf32>
    %53 = arith.addf %51, %52 : vector<1x256xf32>
    %54 = math.tanh %53 : vector<1x256xf32>
    %55 = vector.extract_strided_slice %54 {offsets = [0, 128], sizes = [1, 128], strides = [1, 1]} : vector<1x256xf32> to vector<1x128xf32>
    %c0_45 = arith.constant 0 : index
    %c0_46 = arith.constant 0 : index
    %56 = vector.load %arg5[%c0_45, %c0_46] : memref<128x128xf32, #tpu.memory_space<vmem>>, vector<128x128xf32>
    %cst_47 = arith.constant dense<0.000000e+00> : vector<1x128xf32>
    %57 = tpu.matmul %55, %56, %cst_47 {dimension_numbers = #tpu.dot_dimension_numbers<[1], [0], [0], [1], [0, 0, 1, 1], [], []>} : vector<1x128xf32>, vector<128x128xf32>, vector<1x128xf32> -> vector<1x128xf32>
    %c0_48 = arith.constant 0 : index
    %c0_49 = arith.constant 0 : index
    %58 = vector.load %arg6[%c0_48, %c0_49] : memref<1x128xf32, #tpu.memory_space<vmem>>, vector<1x128xf32>
    %59 = arith.addf %57, %58 : vector<1x128xf32>
    %60 = tpu.concatenate %55, %59 in 0 : vector<1x128xf32>, vector<1x128xf32> -> vector<2x128xf32>
    %c0_50 = arith.constant 0 : index
    %c0_51 = arith.constant 0 : index
    %61 = vector.load %arg7[%c0_50, %c0_51] : memref<2x128xf32, #tpu.memory_space<vmem>>, vector<2x128xf32>
    tpu.vector_store %arg7[%c0_50, %c0_51], %60 {strides = array<i32>} : memref<2x128xf32, #tpu.memory_space<vmem>>, vector<2x128xf32>,
    return
  }
}

</mosaic_0001>

<llo_original>
// kernel: _forward_impl.1
$region0: #{_forward_impl.1}
  #allocation0 [shape = 'u32[]', space=smem, size = 0x4, offset = 0x4, fixed_abs, tag = 'smem constant byte address 0x4 - core index']
  #allocation1 [shape = 'u32[72,128]{1,0:T(1,128)}', space=vmem, size = 0x9000, scoped, tag = 'internal scratch']
  #allocation2 [shape = 'f32[9,256]{1,0:T(8,128)}', space=vmem, size = 0x4000, scoped, tag = 'scratch operand']
  %s0 = inlined_call_operand.vmem [shape: f32[9,544], index: 0, kind: input, shape index: {}]
  %s1 = inlined_call_operand.hbm [shape: f32[544,128], index: 1, kind: input, shape index: {}]
  %s2 = inlined_call_operand.vmem [shape: f32[1,128], index: 2, kind: input, shape index: {}]
  %s3 = inlined_call_operand.vmem [shape: f32[1,128], index: 3, kind: input, shape index: {}]
  %s4 = inlined_call_operand.hbm [shape: f32[256,256], index: 4, kind: input, shape index: {}]
  %s5 = inlined_call_operand.vmem [shape: f32[128,128], index: 5, kind: input, shape index: {}]
  %s6 = inlined_call_operand.vmem [shape: f32[1,128], index: 6, kind: input, shape index: {}]
  %s7 = inlined_call_operand.vmem [shape: f32[2,128], index: 7, kind: output, shape index: {}]
  %s8 = sld [smem:[#allocation0]]
  $region46: #{_forward_impl.1} parent=0
    _
  %s10 = ssub.s32 1, %s8
  %s11 = scalar_select 0, %s10, %s8
  $region1: #{_forward_impl.1} parent=0
    #allocation3 [shape = 'u8[278528]{0}', space=vmem, size = 0x44000, scoped, tag = 'input window, operand 1, single buffered']
    #allocation4 [shape = 's32[1]{0}', space=sflag, size = 0x4, scoped, tag = 'scoped memory for _forward_impl.1']
    #allocation5 [shape = 'u8[262144]{0}', space=vmem, size = 0x40000, scoped, tag = 'input window, operand 4, single buffered']
    #allocation6 [shape = 's32[1]{0}', space=sflag, size = 0x4, scoped, tag = 'scoped memory for _forward_impl.1']
    %12 = vsyncpa [#allocation4], 0
    %13 = vsyncpa [#allocation6], 0
    // Predicated region
    $region2: #{_forward_impl.1} parent=1 // pred_check
      _
    $region3: #{_forward_impl.1} parent=1 // pred_check_branch
      %15 = sbr.rel (0) target = $region5
    $region4: #{_forward_impl.1} parent=1 // pred_region
      _
    $region5: #{_forward_impl.1} parent=1 // pred_fallthru
      _
    // Predicated region
    $region6: #{_forward_impl.1} parent=1 // pred_check
      _
    $region7: #{_forward_impl.1} parent=1 // pred_check_branch
      %17 = sbr.rel (0) target = $region9
    $region8: #{_forward_impl.1} parent=1 // pred_region
      %19 = vsyncadd [#allocation4], 0
      %s20 = sshll.u32 %s1, 4
      %s21 = int_to_ptr.hbm [resolvable:$true] %s20
      %s22 = sshll.u32 [#allocation3], 4
      %s23 = int_to_ptr.vmem [resolvable:$true] %s22
      %28 = dma.hbm_to_vmem [thread:$0]  %s21, 8704, %s23, [#allocation4], 128, 128, 8
    $region9: #{_forward_impl.1} parent=1 // pred_fallthru
      _
    // Predicated region
    $region10: #{_forward_impl.1} parent=1 // pred_check
      _
    $region11: #{_forward_impl.1} parent=1 // pred_check_branch
      %30 = sbr.rel (0) target = $region13
    $region12: #{_forward_impl.1} parent=1 // pred_region
      _
    $region13: #{_forward_impl.1} parent=1 // pred_fallthru
      _
    // Predicated region
    $region14: #{_forward_impl.1} parent=1 // pred_check
      _
    $region15: #{_forward_impl.1} parent=1 // pred_check_branch
      %32 = sbr.rel (0) target = $region17
    $region16: #{_forward_impl.1} parent=1 // pred_region
      _
    $region17: #{_forward_impl.1} parent=1 // pred_fallthru
      _
    // Predicated region
    $region18: #{_forward_impl.1} parent=1 // pred_check
      _
    $region19: #{_forward_impl.1} parent=1 // pred_check_branch
      %34 = sbr.rel (0) target = $region21
    $region20: #{_forward_impl.1} parent=1 // pred_region
      %36 = vsyncadd [#allocation6], 0
      %s37 = sshll.u32 %s4, 4
      %s38 = int_to_ptr.hbm [resolvable:$true] %s37
      %s39 = sshll.u32 [#allocation5], 4
      %s40 = int_to_ptr.vmem [resolvable:$true] %s39
      %45 = dma.hbm_to_vmem [thread:$0]  %s38, 8192, %s40, [#allocation6], 256, 256, 16
    $region21: #{_forward_impl.1} parent=1 // pred_fallthru
      _
    // Predicated region
    $region22: #{_forward_impl.1} parent=1 // pred_check
      _
    $region23: #{_forward_impl.1} parent=1 // pred_check_branch
      %47 = sbr.rel (0) target = $region25
    $region24: #{_forward_impl.1} parent=1 // pred_region
      _
    $region25: #{_forward_impl.1} parent=1 // pred_fallthru
      _
    // Predicated region
    $region26: #{_forward_impl.1} parent=1 // pred_check
      _
    $region27: #{_forward_impl.1} parent=1 // pred_check_branch
      %49 = sbr.rel (0) target = $region29
    $region28: #{_forward_impl.1} parent=1 // pred_region
      _
    $region29: #{_forward_impl.1} parent=1 // pred_fallthru
      _
    // Predicated region
    $region30: #{_forward_impl.1} parent=1 // pred_check
      _
    $region31: #{_forward_impl.1} parent=1 // pred_check_branch
      %51 = sbr.rel (0) target = $region33
    $region32: #{_forward_impl.1} parent=1 // pred_region
      %53 = dma.done [#allocation4], 8704
    $region33: #{_forward_impl.1} parent=1 // pred_fallthru
      _
    // Predicated region
    $region34: #{_forward_impl.1} parent=1 // pred_check
      _
    $region35: #{_forward_impl.1} parent=1 // pred_check_branch
      %55 = sbr.rel (0) target = $region37
    $region36: #{_forward_impl.1} parent=1 // pred_region
      %57 = dma.done [#allocation6], 8192
    $region37: #{_forward_impl.1} parent=1 // pred_fallthru
      _
    %v58 = vld [vmem:[%s0] sm:$0xff]
    %v59 = vld [vmem:[%s0 + $0x8] sm:$0xff]
    %v60 = vld [vmem:[%s0 + $0x10] sm:$0xff]
    %v61 = vld [vmem:[%s0 + $0x18] sm:$0xff]
    %v62 = vld [vmem:[%s0 + $0x20] sm:$0xff]
    %v63 = vld [vmem:[%s0 + $0x28] sm:$0x1]
    %v64 = vld [vmem:[%s0 + $0x30] sm:$0x1]
    %v65 = vld [vmem:[%s0 + $0x38] sm:$0x1]
    %v66 = vld [vmem:[%s0 + $0x40] sm:$0x1]
    %v67 = vld [vmem:[%s0 + $0x48] sm:$0x1]
    %v68 = vld [vmem:[#allocation3] sm:$0xff]
    %v69 = vld [vmem:[#allocation3 + $0x8] sm:$0xff]
    %v70 = vld [vmem:[#allocation3 + $0x10] sm:$0xff]
    %v71 = vld [vmem:[#allocation3 + $0x18] sm:$0xff]
    %v72 = vld [vmem:[#allocation3 + $0x20] sm:$0xff]
    %v73 = vld [vmem:[#allocation3 + $0x28] sm:$0xff]
    %v74 = vld [vmem:[#allocation3 + $0x30] sm:$0xff]
    %v75 = vld [vmem:[#allocation3 + $0x38] sm:$0xff]
    %v76 = vld [vmem:[#allocation3 + $0x40] sm:$0xff]
    %v77 = vld [vmem:[#allocation3 + $0x48] sm:$0xff]
    %v78 = vld [vmem:[#allocation3 + $0x50] sm:$0xff]
    %v79 = vld [vmem:[#allocation3 + $0x58] sm:$0xff]
    %v80 = vld [vmem:[#allocation3 + $0x60] sm:$0xff]
    %v81 = vld [vmem:[#allocation3 + $0x68] sm:$0xff]
    %v82 = vld [vmem:[#allocation3 + $0x70] sm:$0xff]
    %v83 = vld [vmem:[#allocation3 + $0x78] sm:$0xff]
    %v84 = vld [vmem:[#allocation3 + $0x80] sm:$0xff]
    %v85 = vld [vmem:[#allocation3 + $0x88] sm:$0xff]
    %v86 = vld [vmem:[#allocation3 + $0x90] sm:$0xff]
    %v87 = vld [vmem:[#allocation3 + $0x98] sm:$0xff]
    %v88 = vld [vmem:[#allocation3 + $0xa0] sm:$0xff]
    %v89 = vld [vmem:[#allocation3 + $0xa8] sm:$0xff]
    %v90 = vld [vmem:[#allocation3 + $0xb0] sm:$0xff]
    %v91 = vld [vmem:[#allocation3 + $0xb8] sm:$0xff]
    %v92 = vld [vmem:[#allocation3 + $0xc0] sm:$0xff]
    %v93 = vld [vmem:[#allocation3 + $0xc8] sm:$0xff]
    %v94 = vld [vmem:[#allocation3 + $0xd0] sm:$0xff]
    %v95 = vld [vmem:[#allocation3 + $0xd8] sm:$0xff]
    %v96 = vld [vmem:[#allocation3 + $0xe0] sm:$0xff]
    %v97 = vld [vmem:[#allocation3 + $0xe8] sm:$0xff]
    %v98 = vld [vmem:[#allocation3 + $0xf0] sm:$0xff]
    %v99 = vld [vmem:[#allocation3 + $0xf8] sm:$0xff]
    %v100 = vld [vmem:[#allocation3 + $0x100] sm:$0xff]
    %v101 = vld [vmem:[#allocation3 + $0x108] sm:$0xff]
    %v102 = vld [vmem:[#allocation3 + $0x110] sm:$0xff]
    %v103 = vld [vmem:[#allocation3 + $0x118] sm:$0xff]
    %v104 = vld [vmem:[#allocation3 + $0x120] sm:$0xff]
    %v105 = vld [vmem:[#allocation3 + $0x128] sm:$0xff]
    %v106 = vld [vmem:[#allocation3 + $0x130] sm:$0xff]
    %v107 = vld [vmem:[#allocation3 + $0x138] sm:$0xff]
    %v108 = vld [vmem:[#allocation3 + $0x140] sm:$0xff]
    %v109 = vld [vmem:[#allocation3 + $0x148] sm:$0xff]
    %v110 = vld [vmem:[#allocation3 + $0x150] sm:$0xff]
    %v111 = vld [vmem:[#allocation3 + $0x158] sm:$0xff]
    %v112 = vld [vmem:[#allocation3 + $0x160] sm:$0xff]
    %v113 = vld [vmem:[#allocation3 + $0x168] sm:$0xff]
    %v114 = vld [vmem:[#allocation3 + $0x170] sm:$0xff]
    %v115 = vld [vmem:[#allocation3 + $0x178] sm:$0xff]
    %v116 = vld [vmem:[#allocation3 + $0x180] sm:$0xff]
    %v117 = vld [vmem:[#allocation3 + $0x188] sm:$0xff]
    %v118 = vld [vmem:[#allocation3 + $0x190] sm:$0xff]
    %v119 = vld [vmem:[#allocation3 + $0x198] sm:$0xff]
    %v120 = vld [vmem:[#allocation3 + $0x1a0] sm:$0xff]
    %v121 = vld [vmem:[#allocation3 + $0x1a8] sm:$0xff]
    %v122 = vld [vmem:[#allocation3 + $0x1b0] sm:$0xff]
    %v123 = vld [vmem:[#allocation3 + $0x1b8] sm:$0xff]
    %v124 = vld [vmem:[#allocation3 + $0x1c0] sm:$0xff]
    %v125 = vld [vmem:[#allocation3 + $0x1c8] sm:$0xff]
    %v126 = vld [vmem:[#allocation3 + $0x1d0] sm:$0xff]
    %v127 = vld [vmem:[#allocation3 + $0x1d8] sm:$0xff]
    %v128 = vld [vmem:[#allocation3 + $0x1e0] sm:$0xff]
    %v129 = vld [vmem:[#allocation3 + $0x1e8] sm:$0xff]
    %v130 = vld [vmem:[#allocation3 + $0x1f0] sm:$0xff]
    %v131 = vld [vmem:[#allocation3 + $0x1f8] sm:$0xff]
    %v132 = vld [vmem:[#allocation3 + $0x200] sm:$0xff]
    %v133 = vld [vmem:[#allocation3 + $0x208] sm:$0xff]
    %v134 = vld [vmem:[#allocation3 + $0x210] sm:$0xff]
    %v135 = vld [vmem:[#allocation3 + $0x218] sm:$0xff]
    %v136 = vld [vmem:[%s2] sm:$0x1]
    %v138 = vperm.slane %v136, 0
    %vm140 = vcmask 261120
    %v142 = vsel %vm140, %v62, 0
    %v145 = vsel %vm140, %v67, 0
    %147 = vmatpush.msra.mxu0 %v83
    %148 = vmatpush.msra.mxu0 %v82
    %149 = vmatpush.msra.mxu0 %v81
    %150 = vmatpush.msra.mxu0 %v80
    %151 = vmatpush.msra.mxu0 %v79
    %152 = vmatpush.msra.mxu0 %v78
    %153 = vmatpush.msra.mxu0 %v77
    %154 = vmatpush.msra.mxu0 %v76
    %155 = vmatpush.msra.mxu0 %v75
    %156 = vmatpush.msra.mxu0 %v74
    %157 = vmatpush.msra.mxu0 %v73
    %158 = vmatpush.msra.mxu0 %v72
    %159 = vmatpush.msra.mxu0 %v71
    %160 = vmatpush.msra.mxu0 %v70
    %161 = vmatpush.msra.mxu0 %v69
    %162 = vmatpush.msra.mxu0 %v68
    %163 = vmatmul.f32.gmra.mxu0 %v58
    %v164 = vpop.f32.mrf.mxu0
    %v165 = vadd.f32 %v138, %v164
    %166 = vmatmul.f32.gmra.mxu0 %v63
    %v167 = vpop.f32.mrf.mxu0
    %v168 = vadd.f32 %v138, %v167
    %169 = vdwg.mxu0
    %170 = vmatpush.msra.mxu0 %v99
    %171 = vmatpush.msra.mxu0 %v98
    %172 = vmatpush.msra.mxu0 %v97
    %173 = vmatpush.msra.mxu0 %v96
    %174 = vmatpush.msra.mxu0 %v95
    %175 = vmatpush.msra.mxu0 %v94
    %176 = vmatpush.msra.mxu0 %v93
    %177 = vmatpush.msra.mxu0 %v92
    %178 = vmatpush.msra.mxu0 %v91
    %179 = vmatpush.msra.mxu0 %v90
    %180 = vmatpush.msra.mxu0 %v89
    %181 = vmatpush.msra.mxu0 %v88
    %182 = vmatpush.msra.mxu0 %v87
    %183 = vmatpush.msra.mxu0 %v86
    %184 = vmatpush.msra.mxu0 %v85
    %185 = vmatpush.msra.mxu0 %v84
    %186 = vmatmul.f32.gmra.mxu0 %v59
    %v187 = vpop.f32.mrf.mxu0
    %v188 = vadd.f32 %v165, %v187
    %189 = vmatmul.f32.gmra.mxu0 %v64
    %v190 = vpop.f32.mrf.mxu0
    %v191 = vadd.f32 %v168, %v190
    %192 = vdwg.mxu0
    %193 = vmatpush.msra.mxu0 %v115
    %194 = vmatpush.msra.mxu0 %v114
    %195 = vmatpush.msra.mxu0 %v113
    %196 = vmatpush.msra.mxu0 %v112
    %197 = vmatpush.msra.mxu0 %v111
    %198 = vmatpush.msra.mxu0 %v110
    %199 = vmatpush.msra.mxu0 %v109
    %200 = vmatpush.msra.mxu0 %v108
    %201 = vmatpush.msra.mxu0 %v107
    %202 = vmatpush.msra.mxu0 %v106
    %203 = vmatpush.msra.mxu0 %v105
    %204 = vmatpush.msra.mxu0 %v104
    %205 = vmatpush.msra.mxu0 %v103
    %206 = vmatpush.msra.mxu0 %v102
    %207 = vmatpush.msra.mxu0 %v101
    %208 = vmatpush.msra.mxu0 %v100
    %209 = vmatmul.f32.gmra.mxu0 %v60
    %v210 = vpop.f32.mrf.mxu0
    %v211 = vadd.f32 %v188, %v210
    %212 = vmatmul.f32.gmra.mxu0 %v65
    %v213 = vpop.f32.mrf.mxu0
    %v214 = vadd.f32 %v191, %v213
    %215 = vdwg.mxu0
    %216 = vmatpush.msra.mxu0 %v131
    %217 = vmatpush.msra.mxu0 %v130
    %218 = vmatpush.msra.mxu0 %v129
    %219 = vmatpush.msra.mxu0 %v128
    %220 = vmatpush.msra.mxu0 %v127
    %221 = vmatpush.msra.mxu0 %v126
    %222 = vmatpush.msra.mxu0 %v125
    %223 = vmatpush.msra.mxu0 %v124
    %224 = vmatpush.msra.mxu0 %v123
    %225 = vmatpush.msra.mxu0 %v122
    %226 = vmatpush.msra.mxu0 %v121
    %227 = vmatpush.msra.mxu0 %v120
    %228 = vmatpush.msra.mxu0 %v119
    %229 = vmatpush.msra.mxu0 %v118
    %230 = vmatpush.msra.mxu0 %v117
    %231 = vmatpush.msra.mxu0 %v116
    %232 = vmatmul.f32.gmra.mxu0 %v61
    %v233 = vpop.f32.mrf.mxu0
    %v234 = vadd.f32 %v211, %v233
    %235 = vmatmul.f32.gmra.mxu0 %v66
    %v236 = vpop.f32.mrf.mxu0
    %v237 = vadd.f32 %v214, %v236
    %238 = vdwg.mxu0
    %239 = vmatpush.msra.mxu0 0.0
    %240 = vmatpush.msra.mxu0 0.0
    %241 = vmatpush.msra.mxu0 0.0
    %242 = vmatpush.msra.mxu0 0.0
    %243 = vmatpush.msra.mxu0 0.0
    %244 = vmatpush.msra.mxu0 0.0
    %245 = vmatpush.msra.mxu0 0.0
    %246 = vmatpush.msra.mxu0 0.0
    %247 = vmatpush.msra.mxu0 0.0
    %248 = vmatpush.msra.mxu0 0.0
    %249 = vmatpush.msra.mxu0 0.0
    %250 = vmatpush.msra.mxu0 0.0
    %251 = vmatpush.msra.mxu0 %v135
    %252 = vmatpush.msra.mxu0 %v134
    %253 = vmatpush.msra.mxu0 %v133
    %254 = vmatpush.msra.mxu0 %v132
    %255 = vmatmul.f32.gmra.mxu0 %v142
    %v256 = vpop.f32.mrf.mxu0
    %v257 = vadd.f32 %v234, %v256
    %258 = vmatmul.f32.gmra.mxu0 %v145
    %v259 = vpop.f32.mrf.mxu0
    %v260 = vadd.f32 %v237, %v259
    %261 = vdwg.mxu0
    %262 = vst [vmem:[#allocation2] sm:$0xff] %v257
    %263 = vst [vmem:[#allocation2 + $0x10] sm:$0x1] %v260
    %v264 = vld [vmem:[%s3] sm:$0x1]
    %v266 = vperm.slane %v264, 0
    %268 = vst [vmem:[#allocation2 + $0x8] sm:$0xff] %v266
    %269 = vst [vmem:[#allocation2 + $0x18] sm:$0x1] %v266
    %v270 = vld [vmem:[#allocation2] ss:$0 sm:$0xff]
    %v271 = vtanh.pop %v270
    %v272 = vld [vmem:[#allocation5] sm:$0xff]
    %v273 = vld [vmem:[#allocation5 + $0x8] sm:$0xff]
    %v274 = vld [vmem:[#allocation5 + $0x10] sm:$0xff]
    %v275 = vld [vmem:[#allocation5 + $0x18] sm:$0xff]
    %v276 = vld [vmem:[#allocation5 + $0x20] sm:$0xff]
    %v277 = vld [vmem:[#allocation5 + $0x28] sm:$0xff]
    %v278 = vld [vmem:[#allocation5 + $0x30] sm:$0xff]
    %v279 = vld [vmem:[#allocation5 + $0x38] sm:$0xff]
    %v280 = vld [vmem:[#allocation5 + $0x40] sm:$0xff]
    %v281 = vld [vmem:[#allocation5 + $0x48] sm:$0xff]
    %v282 = vld [vmem:[#allocation5 + $0x50] sm:$0xff]
    %v283 = vld [vmem:[#allocation5 + $0x58] sm:$0xff]
    %v284 = vld [vmem:[#allocation5 + $0x60] sm:$0xff]
    %v285 = vld [vmem:[#allocation5 + $0x68] sm:$0xff]
    %v286 = vld [vmem:[#allocation5 + $0x70] sm:$0xff]
    %v287 = vld [vmem:[#allocation5 + $0x78] sm:$0xff]
    %v288 = vld [vmem:[#allocation5 + $0x80] sm:$0xff]
    %v289 = vld [vmem:[#allocation5 + $0x88] sm:$0xff]
    %v290 = vld [vmem:[#allocation5 + $0x90] sm:$0xff]
    %v291 = vld [vmem:[#allocation5 + $0x98] sm:$0xff]
    %v292 = vld [vmem:[#allocation5 + $0xa0] sm:$0xff]
    %v293 = vld [vmem:[#allocation5 + $0xa8] sm:$0xff]
    %v294 = vld [vmem:[#allocation5 + $0xb0] sm:$0xff]
    %v295 = vld [vmem:[#allocation5 + $0xb8] sm:$0xff]
    %v296 = vld [vmem:[#allocation5 + $0xc0] sm:$0xff]
    %v297 = vld [vmem:[#allocation5 + $0xc8] sm:$0xff]
    %v298 = vld [vmem:[#allocation5 + $0xd0] sm:$0xff]
    %v299 = vld [vmem:[#allocation5 + $0xd8] sm:$0xff]
    %v300 = vld [vmem:[#allocation5 + $0xe0] sm:$0xff]
    %v301 = vld [vmem:[#allocation5 + $0xe8] sm:$0xff]
    %v302 = vld [vmem:[#allocation5 + $0xf0] sm:$0xff]
    %v303 = vld [vmem:[#allocation5 + $0xf8] sm:$0xff]
    %v304 = vld [vmem:[#allocation5 + $0x100] sm:$0xff]
    %v305 = vld [vmem:[#allocation5 + $0x108] sm:$0xff]
    %v306 = vld [vmem:[#allocation5 + $0x110] sm:$0xff]
    %v307 = vld [vmem:[#allocation5 + $0x118] sm:$0xff]
    %v308 = vld [vmem:[#allocation5 + $0x120] sm:$0xff]
    %v309 = vld [vmem:[#allocation5 + $0x128] sm:$0xff]
    %v310 = vld [vmem:[#allocation5 + $0x130] sm:$0xff]
    %v311 = vld [vmem:[#allocation5 + $0x138] sm:$0xff]
    %v312 = vld [vmem:[#allocation5 + $0x140] sm:$0xff]
    %v313 = vld [vmem:[#allocation5 + $0x148] sm:$0xff]
    %v314 = vld [vmem:[#allocation5 + $0x150] sm:$0xff]
    %v315 = vld [vmem:[#allocation5 + $0x158] sm:$0xff]
    %v316 = vld [vmem:[#allocation5 + $0x160] sm:$0xff]
    %v317 = vld [vmem:[#allocation5 + $0x168] sm:$0xff]
    %v318 = vld [vmem:[#allocation5 + $0x170] sm:$0xff]
    %v319 = vld [vmem:[#allocation5 + $0x178] sm:$0xff]
    %v320 = vld [vmem:[#allocation5 + $0x180] sm:$0xff]
    %v321 = vld [vmem:[#allocation5 + $0x188] sm:$0xff]
    %v322 = vld [vmem:[#allocation5 + $0x190] sm:$0xff]
    %v323 = vld [vmem:[#allocation5 + $0x198] sm:$0xff]
    %v324 = vld [vmem:[#allocation5 + $0x1a0] sm:$0xff]
    %v325 = vld [vmem:[#allocation5 + $0x1a8] sm:$0xff]
    %v326 = vld [vmem:[#allocation5 + $0x1b0] sm:$0xff]
    %v327 = vld [vmem:[#allocation5 + $0x1b8] sm:$0xff]
    %v328 = vld [vmem:[#allocation5 + $0x1c0] sm:$0xff]
    %v329 = vld [vmem:[#allocation5 + $0x1c8] sm:$0xff]
    %v330 = vld [vmem:[#allocation5 + $0x1d0] sm:$0xff]
    %v331 = vld [vmem:[#allocation5 + $0x1d8] sm:$0xff]
    %v332 = vld [vmem:[#allocation5 + $0x1e0] sm:$0xff]
    %v333 = vld [vmem:[#allocation5 + $0x1e8] sm:$0xff]
    %v334 = vld [vmem:[#allocation5 + $0x1f0] sm:$0xff]
    %v335 = vld [vmem:[#allocation5 + $0x1f8] sm:$0xff]
    %s336 = scalar_lea.vmem [#allocation2], 1
    %v337 = vld [vmem:[%s336] ss:$8 sm:$0x3]
    %v339 = vperm.slane %v337, 0
    %v340 = vperm.slane %v337, 1
    %343 = vmatpush.msra.mxu0 %v302
    %344 = vmatpush.msra.mxu0 %v300
    %345 = vmatpush.msra.mxu0 %v298
    %346 = vmatpush.msra.mxu0 %v296
    %347 = vmatpush.msra.mxu0 %v294
    %348 = vmatpush.msra.mxu0 %v292
    %349 = vmatpush.msra.mxu0 %v290
    %350 = vmatpush.msra.mxu0 %v288
    %351 = vmatpush.msra.mxu0 %v286
    %352 = vmatpush.msra.mxu0 %v284
    %353 = vmatpush.msra.mxu0 %v282
    %354 = vmatpush.msra.mxu0 %v280
    %355 = vmatpush.msra.mxu0 %v278
    %356 = vmatpush.msra.mxu0 %v276
    %357 = vmatpush.msra.mxu0 %v274
    %358 = vmatpush.msra.mxu0 %v272
    %359 = vmatmul.f32.gmra.mxu0 %v271
    %v360 = vpop.f32.mrf.mxu0
    %v361 = vadd.f32 %v339, %v360
    %362 = vdwg.mxu0
    %363 = vmatpush.msra.mxu0 %v334
    %364 = vmatpush.msra.mxu0 %v332
    %365 = vmatpush.msra.mxu0 %v330
    %366 = vmatpush.msra.mxu0 %v328
    %367 = vmatpush.msra.mxu0 %v326
    %368 = vmatpush.msra.mxu0 %v324
    %369 = vmatpush.msra.mxu0 %v322
    %370 = vmatpush.msra.mxu0 %v320
    %371 = vmatpush.msra.mxu0 %v318
    %372 = vmatpush.msra.mxu0 %v316
    %373 = vmatpush.msra.mxu0 %v314
    %374 = vmatpush.msra.mxu0 %v312
    %375 = vmatpush.msra.mxu0 %v310
    %376 = vmatpush.msra.mxu0 %v308
    %377 = vmatpush.msra.mxu0 %v306
    %378 = vmatpush.msra.mxu0 %v304
    %379 = vmatmul.f32.gmra.mxu0 0.0
    %v380 = vpop.f32.mrf.mxu0
    %v381 = vadd.f32 %v361, %v380
    %382 = vdwg.mxu0
    %383 = vmatpush.msra.mxu0 %v303
    %384 = vmatpush.msra.mxu0 %v301
    %385 = vmatpush.msra.mxu0 %v299
    %386 = vmatpush.msra.mxu0 %v297
    %387 = vmatpush.msra.mxu0 %v295
    %388 = vmatpush.msra.mxu0 %v293
    %389 = vmatpush.msra.mxu0 %v291
    %390 = vmatpush.msra.mxu0 %v289
    %391 = vmatpush.msra.mxu0 %v287
    %392 = vmatpush.msra.mxu0 %v285
    %393 = vmatpush.msra.mxu0 %v283
    %394 = vmatpush.msra.mxu0 %v281
    %395 = vmatpush.msra.mxu0 %v279
    %396 = vmatpush.msra.mxu0 %v277
    %397 = vmatpush.msra.mxu0 %v275
    %398 = vmatpush.msra.mxu0 %v273
    %399 = vmatmul.f32.gmra.mxu0 %v271
    %v400 = vpop.f32.mrf.mxu0
    %v401 = vadd.f32 %v340, %v400
    %402 = vdwg.mxu0
    %403 = vmatpush.msra.mxu0 %v335
    %404 = vmatpush.msra.mxu0 %v333
    %405 = vmatpush.msra.mxu0 %v331
    %406 = vmatpush.msra.mxu0 %v329
    %407 = vmatpush.msra.mxu0 %v327
    %408 = vmatpush.msra.mxu0 %v325
    %409 = vmatpush.msra.mxu0 %v323
    %410 = vmatpush.msra.mxu0 %v321
    %411 = vmatpush.msra.mxu0 %v319
    %412 = vmatpush.msra.mxu0 %v317
    %413 = vmatpush.msra.mxu0 %v315
    %414 = vmatpush.msra.mxu0 %v313
    %415 = vmatpush.msra.mxu0 %v311
    %416 = vmatpush.msra.mxu0 %v309
    %417 = vmatpush.msra.mxu0 %v307
    %418 = vmatpush.msra.mxu0 %v305
    %419 = vmatmul.f32.gmra.mxu0 0.0
    %v420 = vpop.f32.mrf.mxu0
    %v421 = vadd.f32 %v401, %v420
    %422 = vdwg.mxu0
    %v423 = vtanh.pop %v381
    %v424 = vtanh.pop %v421
    %s425 = scalar_lea.vmem [#allocation2], 2
    %v426 = vld [vmem:[%s425] ss:$8 sm:$0x3]
    %v428 = vperm.slane %v426, 0
    %v429 = vperm.slane %v426, 1
    %432 = vmatpush.msra.mxu0 %v302
    %433 = vmatpush.msra.mxu0 %v300
    %434 = vmatpush.msra.mxu0 %v298
    %435 = vmatpush.msra.mxu0 %v296
    %436 = vmatpush.msra.mxu0 %v294
    %437 = vmatpush.msra.mxu0 %v292
    %438 = vmatpush.msra.mxu0 %v290
    %439 = vmatpush.msra.mxu0 %v288
    %440 = vmatpush.msra.mxu0 %v286
    %441 = vmatpush.msra.mxu0 %v284
    %442 = vmatpush.msra.mxu0 %v282
    %443 = vmatpush.msra.mxu0 %v280
    %444 = vmatpush.msra.mxu0 %v278
    %445 = vmatpush.msra.mxu0 %v276
    %446 = vmatpush.msra.mxu0 %v274
    %447 = vmatpush.msra.mxu0 %v272
    %448 = vmatmul.f32.gmra.mxu0 %v423
    %v449 = vpop.f32.mrf.mxu0
    %v450 = vadd.f32 %v428, %v449
    %451 = vdwg.mxu0
    %452 = vmatpush.msra.mxu0 %v334
    %453 = vmatpush.msra.mxu0 %v332
    %454 = vmatpush.msra.mxu0 %v330
    %455 = vmatpush.msra.mxu0 %v328
    %456 = vmatpush.msra.mxu0 %v326
    %457 = vmatpush.msra.mxu0 %v324
    %458 = vmatpush.msra.mxu0 %v322
    %459 = vmatpush.msra.mxu0 %v320
    %460 = vmatpush.msra.mxu0 %v318
    %461 = vmatpush.msra.mxu0 %v316
    %462 = vmatpush.msra.mxu0 %v314
    %463 = vmatpush.msra.mxu0 %v312
    %464 = vmatpush.msra.mxu0 %v310
    %465 = vmatpush.msra.mxu0 %v308
    %466 = vmatpush.msra.mxu0 %v306
    %467 = vmatpush.msra.mxu0 %v304
    %468 = vmatmul.f32.gmra.mxu0 %v424
    %v469 = vpop.f32.mrf.mxu0
    %v470 = vadd.f32 %v450, %v469
    %471 = vdwg.mxu0
    %472 = vmatpush.msra.mxu0 %v303
    %473 = vmatpush.msra.mxu0 %v301
    %474 = vmatpush.msra.mxu0 %v299
    %475 = vmatpush.msra.mxu0 %v297
    %476 = vmatpush.msra.mxu0 %v295
    %477 = vmatpush.msra.mxu0 %v293
    %478 = vmatpush.msra.mxu0 %v291
    %479 = vmatpush.msra.mxu0 %v289
    %480 = vmatpush.msra.mxu0 %v287
    %481 = vmatpush.msra.mxu0 %v285
    %482 = vmatpush.msra.mxu0 %v283
    %483 = vmatpush.msra.mxu0 %v281
    %484 = vmatpush.msra.mxu0 %v279
    %485 = vmatpush.msra.mxu0 %v277
    %486 = vmatpush.msra.mxu0 %v275
    %487 = vmatpush.msra.mxu0 %v273
    %488 = vmatmul.f32.gmra.mxu0 %v423
    %v489 = vpop.f32.mrf.mxu0
    %v490 = vadd.f32 %v429, %v489
    %491 = vdwg.mxu0
    %492 = vmatpush.msra.mxu0 %v335
    %493 = vmatpush.msra.mxu0 %v333
    %494 = vmatpush.msra.mxu0 %v331
    %495 = vmatpush.msra.mxu0 %v329
    %496 = vmatpush.msra.mxu0 %v327
    %497 = vmatpush.msra.mxu0 %v325
    %498 = vmatpush.msra.mxu0 %v323
    %499 = vmatpush.msra.mxu0 %v321
    %500 = vmatpush.msra.mxu0 %v319
    %501 = vmatpush.msra.mxu0 %v317
    %502 = vmatpush.msra.mxu0 %v315
    %503 = vmatpush.msra.mxu0 %v313
    %504 = vmatpush.msra.mxu0 %v311
    %505 = vmatpush.msra.mxu0 %v309
    %506 = vmatpush.msra.mxu0 %v307
    %507 = vmatpush.msra.mxu0 %v305
    %508 = vmatmul.f32.gmra.mxu0 %v424
    %v509 = vpop.f32.mrf.mxu0
    %v510 = vadd.f32 %v490, %v509
    %511 = vdwg.mxu0
    %v512 = vtanh.pop %v470
    %v513 = vtanh.pop %v510
    %s514 = scalar_lea.vmem [#allocation2], 3
    %v515 = vld [vmem:[%s514] ss:$8 sm:$0x3]
    %v517 = vperm.slane %v515, 0
    %v518 = vperm.slane %v515, 1
    %521 = vmatpush.msra.mxu0 %v302
    %522 = vmatpush.msra.mxu0 %v300
    %523 = vmatpush.msra.mxu0 %v298
    %524 = vmatpush.msra.mxu0 %v296
    %525 = vmatpush.msra.mxu0 %v294
    %526 = vmatpush.msra.mxu0 %v292
    %527 = vmatpush.msra.mxu0 %v290
    %528 = vmatpush.msra.mxu0 %v288
    %529 = vmatpush.msra.mxu0 %v286
    %530 = vmatpush.msra.mxu0 %v284
    %531 = vmatpush.msra.mxu0 %v282
    %532 = vmatpush.msra.mxu0 %v280
    %533 = vmatpush.msra.mxu0 %v278
    %534 = vmatpush.msra.mxu0 %v276
    %535 = vmatpush.msra.mxu0 %v274
    %536 = vmatpush.msra.mxu0 %v272
    %537 = vmatmul.f32.gmra.mxu0 %v512
    %v538 = vpop.f32.mrf.mxu0
    %v539 = vadd.f32 %v517, %v538
    %540 = vdwg.mxu0
    %541 = vmatpush.msra.mxu0 %v334
    %542 = vmatpush.msra.mxu0 %v332
    %543 = vmatpush.msra.mxu0 %v330
    %544 = vmatpush.msra.mxu0 %v328
    %545 = vmatpush.msra.mxu0 %v326
    %546 = vmatpush.msra.mxu0 %v324
    %547 = vmatpush.msra.mxu0 %v322
    %548 = vmatpush.msra.mxu0 %v320
    %549 = vmatpush.msra.mxu0 %v318
    %550 = vmatpush.msra.mxu0 %v316
    %551 = vmatpush.msra.mxu0 %v314
    %552 = vmatpush.msra.mxu0 %v312
    %553 = vmatpush.msra.mxu0 %v310
    %554 = vmatpush.msra.mxu0 %v308
    %555 = vmatpush.msra.mxu0 %v306
    %556 = vmatpush.msra.mxu0 %v304
    %557 = vmatmul.f32.gmra.mxu0 %v513
    %v558 = vpop.f32.mrf.mxu0
    %v559 = vadd.f32 %v539, %v558
    %560 = vdwg.mxu0
    %561 = vmatpush.msra.mxu0 %v303
    %562 = vmatpush.msra.mxu0 %v301
    %563 = vmatpush.msra.mxu0 %v299
    %564 = vmatpush.msra.mxu0 %v297
    %565 = vmatpush.msra.mxu0 %v295
    %566 = vmatpush.msra.mxu0 %v293
    %567 = vmatpush.msra.mxu0 %v291
    %568 = vmatpush.msra.mxu0 %v289
    %569 = vmatpush.msra.mxu0 %v287
    %570 = vmatpush.msra.mxu0 %v285
    %571 = vmatpush.msra.mxu0 %v283
    %572 = vmatpush.msra.mxu0 %v281
    %573 = vmatpush.msra.mxu0 %v279
    %574 = vmatpush.msra.mxu0 %v277
    %575 = vmatpush.msra.mxu0 %v275
    %576 = vmatpush.msra.mxu0 %v273
    %577 = vmatmul.f32.gmra.mxu0 %v512
    %v578 = vpop.f32.mrf.mxu0
    %v579 = vadd.f32 %v518, %v578
    %580 = vdwg.mxu0
    %581 = vmatpush.msra.mxu0 %v335
    %582 = vmatpush.msra.mxu0 %v333
    %583 = vmatpush.msra.mxu0 %v331
    %584 = vmatpush.msra.mxu0 %v329
    %585 = vmatpush.msra.mxu0 %v327
    %586 = vmatpush.msra.mxu0 %v325
    %587 = vmatpush.msra.mxu0 %v323
    %588 = vmatpush.msra.mxu0 %v321
    %589 = vmatpush.msra.mxu0 %v319
    %590 = vmatpush.msra.mxu0 %v317
    %591 = vmatpush.msra.mxu0 %v315
    %592 = vmatpush.msra.mxu0 %v313
    %593 = vmatpush.msra.mxu0 %v311
    %594 = vmatpush.msra.mxu0 %v309
    %595 = vmatpush.msra.mxu0 %v307
    %596 = vmatpush.msra.mxu0 %v305
    %597 = vmatmul.f32.gmra.mxu0 %v513
    %v598 = vpop.f32.mrf.mxu0
    %v599 = vadd.f32 %v579, %v598
    %600 = vdwg.mxu0
    %v601 = vtanh.pop %v559
    %v602 = vtanh.pop %v599
    %s603 = scalar_lea.vmem [#allocation2], 4
    %v604 = vld [vmem:[%s603] ss:$8 sm:$0x3]
    %v606 = vperm.slane %v604, 0
    %v607 = vperm.slane %v604, 1
    %610 = vmatpush.msra.mxu0 %v302
    %611 = vmatpush.msra.mxu0 %v300
    %612 = vmatpush.msra.mxu0 %v298
    %613 = vmatpush.msra.mxu0 %v296
    %614 = vmatpush.msra.mxu0 %v294
    %615 = vmatpush.msra.mxu0 %v292
    %616 = vmatpush.msra.mxu0 %v290
    %617 = vmatpush.msra.mxu0 %v288
    %618 = vmatpush.msra.mxu0 %v286
    %619 = vmatpush.msra.mxu0 %v284
    %620 = vmatpush.msra.mxu0 %v282
    %621 = vmatpush.msra.mxu0 %v280
    %622 = vmatpush.msra.mxu0 %v278
    %623 = vmatpush.msra.mxu0 %v276
    %624 = vmatpush.msra.mxu0 %v274
    %625 = vmatpush.msra.mxu0 %v272
    %626 = vmatmul.f32.gmra.mxu0 %v601
    %v627 = vpop.f32.mrf.mxu0
    %v628 = vadd.f32 %v606, %v627
    %629 = vdwg.mxu0
    %630 = vmatpush.msra.mxu0 %v334
    %631 = vmatpush.msra.mxu0 %v332
    %632 = vmatpush.msra.mxu0 %v330
    %633 = vmatpush.msra.mxu0 %v328
    %634 = vmatpush.msra.mxu0 %v326
    %635 = vmatpush.msra.mxu0 %v324
    %636 = vmatpush.msra.mxu0 %v322
    %637 = vmatpush.msra.mxu0 %v320
    %638 = vmatpush.msra.mxu0 %v318
    %639 = vmatpush.msra.mxu0 %v316
    %640 = vmatpush.msra.mxu0 %v314
    %641 = vmatpush.msra.mxu0 %v312
    %642 = vmatpush.msra.mxu0 %v310
    %643 = vmatpush.msra.mxu0 %v308
    %644 = vmatpush.msra.mxu0 %v306
    %645 = vmatpush.msra.mxu0 %v304
    %646 = vmatmul.f32.gmra.mxu0 %v602
    %v647 = vpop.f32.mrf.mxu0
    %v648 = vadd.f32 %v628, %v647
    %649 = vdwg.mxu0
    %650 = vmatpush.msra.mxu0 %v303
    %651 = vmatpush.msra.mxu0 %v301
    %652 = vmatpush.msra.mxu0 %v299
    %653 = vmatpush.msra.mxu0 %v297
    %654 = vmatpush.msra.mxu0 %v295
    %655 = vmatpush.msra.mxu0 %v293
    %656 = vmatpush.msra.mxu0 %v291
    %657 = vmatpush.msra.mxu0 %v289
    %658 = vmatpush.msra.mxu0 %v287
    %659 = vmatpush.msra.mxu0 %v285
    %660 = vmatpush.msra.mxu0 %v283
    %661 = vmatpush.msra.mxu0 %v281
    %662 = vmatpush.msra.mxu0 %v279
    %663 = vmatpush.msra.mxu0 %v277
    %664 = vmatpush.msra.mxu0 %v275
    %665 = vmatpush.msra.mxu0 %v273
    %666 = vmatmul.f32.gmra.mxu0 %v601
    %v667 = vpop.f32.mrf.mxu0
    %v668 = vadd.f32 %v607, %v667
    %669 = vdwg.mxu0
    %670 = vmatpush.msra.mxu0 %v335
    %671 = vmatpush.msra.mxu0 %v333
    %672 = vmatpush.msra.mxu0 %v331
    %673 = vmatpush.msra.mxu0 %v329
    %674 = vmatpush.msra.mxu0 %v327
    %675 = vmatpush.msra.mxu0 %v325
    %676 = vmatpush.msra.mxu0 %v323
    %677 = vmatpush.msra.mxu0 %v321
    %678 = vmatpush.msra.mxu0 %v319
    %679 = vmatpush.msra.mxu0 %v317
    %680 = vmatpush.msra.mxu0 %v315
    %681 = vmatpush.msra.mxu0 %v313
    %682 = vmatpush.msra.mxu0 %v311
    %683 = vmatpush.msra.mxu0 %v309
    %684 = vmatpush.msra.mxu0 %v307
    %685 = vmatpush.msra.mxu0 %v305
    %686 = vmatmul.f32.gmra.mxu0 %v602
    %v687 = vpop.f32.mrf.mxu0
    %v688 = vadd.f32 %v668, %v687
    %689 = vdwg.mxu0
    %v690 = vtanh.pop %v648
    %v691 = vtanh.pop %v688
    %s692 = scalar_lea.vmem [#allocation2], 5
    %v693 = vld [vmem:[%s692] ss:$8 sm:$0x3]
    %v695 = vperm.slane %v693, 0
    %v696 = vperm.slane %v693, 1
    %699 = vmatpush.msra.mxu0 %v302
    %700 = vmatpush.msra.mxu0 %v300
    %701 = vmatpush.msra.mxu0 %v298
    %702 = vmatpush.msra.mxu0 %v296
    %703 = vmatpush.msra.mxu0 %v294
    %704 = vmatpush.msra.mxu0 %v292
    %705 = vmatpush.msra.mxu0 %v290
    %706 = vmatpush.msra.mxu0 %v288
    %707 = vmatpush.msra.mxu0 %v286
    %708 = vmatpush.msra.mxu0 %v284
    %709 = vmatpush.msra.mxu0 %v282
    %710 = vmatpush.msra.mxu0 %v280
    %711 = vmatpush.msra.mxu0 %v278
    %712 = vmatpush.msra.mxu0 %v276
    %713 = vmatpush.msra.mxu0 %v274
    %714 = vmatpush.msra.mxu0 %v272
    %715 = vmatmul.f32.gmra.mxu0 %v690
    %v716 = vpop.f32.mrf.mxu0
    %v717 = vadd.f32 %v695, %v716
    %718 = vdwg.mxu0
    %719 = vmatpush.msra.mxu0 %v334
    %720 = vmatpush.msra.mxu0 %v332
    %721 = vmatpush.msra.mxu0 %v330
    %722 = vmatpush.msra.mxu0 %v328
    %723 = vmatpush.msra.mxu0 %v326
    %724 = vmatpush.msra.mxu0 %v324
    %725 = vmatpush.msra.mxu0 %v322
    %726 = vmatpush.msra.mxu0 %v320
    %727 = vmatpush.msra.mxu0 %v318
    %728 = vmatpush.msra.mxu0 %v316
    %729 = vmatpush.msra.mxu0 %v314
    %730 = vmatpush.msra.mxu0 %v312
    %731 = vmatpush.msra.mxu0 %v310
    %732 = vmatpush.msra.mxu0 %v308
    %733 = vmatpush.msra.mxu0 %v306
    %734 = vmatpush.msra.mxu0 %v304
    %735 = vmatmul.f32.gmra.mxu0 %v691
    %v736 = vpop.f32.mrf.mxu0
    %v737 = vadd.f32 %v717, %v736
    %738 = vdwg.mxu0
    %739 = vmatpush.msra.mxu0 %v303
    %740 = vmatpush.msra.mxu0 %v301
    %741 = vmatpush.msra.mxu0 %v299
    %742 = vmatpush.msra.mxu0 %v297
    %743 = vmatpush.msra.mxu0 %v295
    %744 = vmatpush.msra.mxu0 %v293
    %745 = vmatpush.msra.mxu0 %v291
    %746 = vmatpush.msra.mxu0 %v289
    %747 = vmatpush.msra.mxu0 %v287
    %748 = vmatpush.msra.mxu0 %v285
    %749 = vmatpush.msra.mxu0 %v283
    %750 = vmatpush.msra.mxu0 %v281
    %751 = vmatpush.msra.mxu0 %v279
    %752 = vmatpush.msra.mxu0 %v277
    %753 = vmatpush.msra.mxu0 %v275
    %754 = vmatpush.msra.mxu0 %v273
    %755 = vmatmul.f32.gmra.mxu0 %v690
    %v756 = vpop.f32.mrf.mxu0
    %v757 = vadd.f32 %v696, %v756
    %758 = vdwg.mxu0
    %759 = vmatpush.msra.mxu0 %v335
    %760 = vmatpush.msra.mxu0 %v333
    %761 = vmatpush.msra.mxu0 %v331
    %762 = vmatpush.msra.mxu0 %v329
    %763 = vmatpush.msra.mxu0 %v327
    %764 = vmatpush.msra.mxu0 %v325
    %765 = vmatpush.msra.mxu0 %v323
    %766 = vmatpush.msra.mxu0 %v321
    %767 = vmatpush.msra.mxu0 %v319
    %768 = vmatpush.msra.mxu0 %v317
    %769 = vmatpush.msra.mxu0 %v315
    %770 = vmatpush.msra.mxu0 %v313
    %771 = vmatpush.msra.mxu0 %v311
    %772 = vmatpush.msra.mxu0 %v309
    %773 = vmatpush.msra.mxu0 %v307
    %774 = vmatpush.msra.mxu0 %v305
    %775 = vmatmul.f32.gmra.mxu0 %v691
    %v776 = vpop.f32.mrf.mxu0
    %v777 = vadd.f32 %v757, %v776
    %778 = vdwg.mxu0
    %v779 = vtanh.pop %v737
    %v780 = vtanh.pop %v777
    %s781 = scalar_lea.vmem [#allocation2], 6
    %v782 = vld [vmem:[%s781] ss:$8 sm:$0x3]
    %v784 = vperm.slane %v782, 0
    %v785 = vperm.slane %v782, 1
    %788 = vmatpush.msra.mxu0 %v302
    %789 = vmatpush.msra.mxu0 %v300
    %790 = vmatpush.msra.mxu0 %v298
    %791 = vmatpush.msra.mxu0 %v296
    %792 = vmatpush.msra.mxu0 %v294
    %793 = vmatpush.msra.mxu0 %v292
    %794 = vmatpush.msra.mxu0 %v290
    %795 = vmatpush.msra.mxu0 %v288
    %796 = vmatpush.msra.mxu0 %v286
    %797 = vmatpush.msra.mxu0 %v284
    %798 = vmatpush.msra.mxu0 %v282
    %799 = vmatpush.msra.mxu0 %v280
    %800 = vmatpush.msra.mxu0 %v278
    %801 = vmatpush.msra.mxu0 %v276
    %802 = vmatpush.msra.mxu0 %v274
    %803 = vmatpush.msra.mxu0 %v272
    %804 = vmatmul.f32.gmra.mxu0 %v779
    %v805 = vpop.f32.mrf.mxu0
    %v806 = vadd.f32 %v784, %v805
    %807 = vdwg.mxu0
    %808 = vmatpush.msra.mxu0 %v334
    %809 = vmatpush.msra.mxu0 %v332
    %810 = vmatpush.msra.mxu0 %v330
    %811 = vmatpush.msra.mxu0 %v328
    %812 = vmatpush.msra.mxu0 %v326
    %813 = vmatpush.msra.mxu0 %v324
    %814 = vmatpush.msra.mxu0 %v322
    %815 = vmatpush.msra.mxu0 %v320
    %816 = vmatpush.msra.mxu0 %v318
    %817 = vmatpush.msra.mxu0 %v316
    %818 = vmatpush.msra.mxu0 %v314
    %819 = vmatpush.msra.mxu0 %v312
    %820 = vmatpush.msra.mxu0 %v310
    %821 = vmatpush.msra.mxu0 %v308
    %822 = vmatpush.msra.mxu0 %v306
    %823 = vmatpush.msra.mxu0 %v304
    %824 = vmatmul.f32.gmra.mxu0 %v780
    %v825 = vpop.f32.mrf.mxu0
    %v826 = vadd.f32 %v806, %v825
    %827 = vdwg.mxu0
    %828 = vmatpush.msra.mxu0 %v303
    %829 = vmatpush.msra.mxu0 %v301
    %830 = vmatpush.msra.mxu0 %v299
    %831 = vmatpush.msra.mxu0 %v297
    %832 = vmatpush.msra.mxu0 %v295
    %833 = vmatpush.msra.mxu0 %v293
    %834 = vmatpush.msra.mxu0 %v291
    %835 = vmatpush.msra.mxu0 %v289
    %836 = vmatpush.msra.mxu0 %v287
    %837 = vmatpush.msra.mxu0 %v285
    %838 = vmatpush.msra.mxu0 %v283
    %839 = vmatpush.msra.mxu0 %v281
    %840 = vmatpush.msra.mxu0 %v279
    %841 = vmatpush.msra.mxu0 %v277
    %842 = vmatpush.msra.mxu0 %v275
    %843 = vmatpush.msra.mxu0 %v273
    %844 = vmatmul.f32.gmra.mxu0 %v779
    %v845 = vpop.f32.mrf.mxu0
    %v846 = vadd.f32 %v785, %v845
    %847 = vdwg.mxu0
    %848 = vmatpush.msra.mxu0 %v335
    %849 = vmatpush.msra.mxu0 %v333
    %850 = vmatpush.msra.mxu0 %v331
    %851 = vmatpush.msra.mxu0 %v329
    %852 = vmatpush.msra.mxu0 %v327
    %853 = vmatpush.msra.mxu0 %v325
    %854 = vmatpush.msra.mxu0 %v323
    %855 = vmatpush.msra.mxu0 %v321
    %856 = vmatpush.msra.mxu0 %v319
    %857 = vmatpush.msra.mxu0 %v317
    %858 = vmatpush.msra.mxu0 %v315
    %859 = vmatpush.msra.mxu0 %v313
    %860 = vmatpush.msra.mxu0 %v311
    %861 = vmatpush.msra.mxu0 %v309
    %862 = vmatpush.msra.mxu0 %v307
    %863 = vmatpush.msra.mxu0 %v305
    %864 = vmatmul.f32.gmra.mxu0 %v780
    %v865 = vpop.f32.mrf.mxu0
    %v866 = vadd.f32 %v846, %v865
    %867 = vdwg.mxu0
    %v868 = vtanh.pop %v826
    %v869 = vtanh.pop %v866
    %s870 = scalar_lea.vmem [#allocation2], 7
    %v871 = vld [vmem:[%s870] ss:$8 sm:$0x3]
    %v873 = vperm.slane %v871, 0
    %v874 = vperm.slane %v871, 1
    %877 = vmatpush.msra.mxu0 %v302
    %878 = vmatpush.msra.mxu0 %v300
    %879 = vmatpush.msra.mxu0 %v298
    %880 = vmatpush.msra.mxu0 %v296
    %881 = vmatpush.msra.mxu0 %v294
    %882 = vmatpush.msra.mxu0 %v292
    %883 = vmatpush.msra.mxu0 %v290
    %884 = vmatpush.msra.mxu0 %v288
    %885 = vmatpush.msra.mxu0 %v286
    %886 = vmatpush.msra.mxu0 %v284
    %887 = vmatpush.msra.mxu0 %v282
    %888 = vmatpush.msra.mxu0 %v280
    %889 = vmatpush.msra.mxu0 %v278
    %890 = vmatpush.msra.mxu0 %v276
    %891 = vmatpush.msra.mxu0 %v274
    %892 = vmatpush.msra.mxu0 %v272
    %893 = vmatmul.f32.gmra.mxu0 %v868
    %v894 = vpop.f32.mrf.mxu0
    %v895 = vadd.f32 %v873, %v894
    %896 = vdwg.mxu0
    %897 = vmatpush.msra.mxu0 %v334
    %898 = vmatpush.msra.mxu0 %v332
    %899 = vmatpush.msra.mxu0 %v330
    %900 = vmatpush.msra.mxu0 %v328
    %901 = vmatpush.msra.mxu0 %v326
    %902 = vmatpush.msra.mxu0 %v324
    %903 = vmatpush.msra.mxu0 %v322
    %904 = vmatpush.msra.mxu0 %v320
    %905 = vmatpush.msra.mxu0 %v318
    %906 = vmatpush.msra.mxu0 %v316
    %907 = vmatpush.msra.mxu0 %v314
    %908 = vmatpush.msra.mxu0 %v312
    %909 = vmatpush.msra.mxu0 %v310
    %910 = vmatpush.msra.mxu0 %v308
    %911 = vmatpush.msra.mxu0 %v306
    %912 = vmatpush.msra.mxu0 %v304
    %913 = vmatmul.f32.gmra.mxu0 %v869
    %v914 = vpop.f32.mrf.mxu0
    %v915 = vadd.f32 %v895, %v914
    %916 = vdwg.mxu0
    %917 = vmatpush.msra.mxu0 %v303
    %918 = vmatpush.msra.mxu0 %v301
    %919 = vmatpush.msra.mxu0 %v299
    %920 = vmatpush.msra.mxu0 %v297
    %921 = vmatpush.msra.mxu0 %v295
    %922 = vmatpush.msra.mxu0 %v293
    %923 = vmatpush.msra.mxu0 %v291
    %924 = vmatpush.msra.mxu0 %v289
    %925 = vmatpush.msra.mxu0 %v287
    %926 = vmatpush.msra.mxu0 %v285
    %927 = vmatpush.msra.mxu0 %v283
    %928 = vmatpush.msra.mxu0 %v281
    %929 = vmatpush.msra.mxu0 %v279
    %930 = vmatpush.msra.mxu0 %v277
    %931 = vmatpush.msra.mxu0 %v275
    %932 = vmatpush.msra.mxu0 %v273
    %933 = vmatmul.f32.gmra.mxu0 %v868
    %v934 = vpop.f32.mrf.mxu0
    %v935 = vadd.f32 %v874, %v934
    %936 = vdwg.mxu0
    %937 = vmatpush.msra.mxu0 %v335
    %938 = vmatpush.msra.mxu0 %v333
    %939 = vmatpush.msra.mxu0 %v331
    %940 = vmatpush.msra.mxu0 %v329
    %941 = vmatpush.msra.mxu0 %v327
    %942 = vmatpush.msra.mxu0 %v325
    %943 = vmatpush.msra.mxu0 %v323
    %944 = vmatpush.msra.mxu0 %v321
    %945 = vmatpush.msra.mxu0 %v319
    %946 = vmatpush.msra.mxu0 %v317
    %947 = vmatpush.msra.mxu0 %v315
    %948 = vmatpush.msra.mxu0 %v313
    %949 = vmatpush.msra.mxu0 %v311
    %950 = vmatpush.msra.mxu0 %v309
    %951 = vmatpush.msra.mxu0 %v307
    %952 = vmatpush.msra.mxu0 %v305
    %953 = vmatmul.f32.gmra.mxu0 %v869
    %v954 = vpop.f32.mrf.mxu0
    %v955 = vadd.f32 %v935, %v954
    %956 = vdwg.mxu0
    %v957 = vtanh.pop %v915
    %v958 = vtanh.pop %v955
    %s959 = scalar_lea.vmem [#allocation2], 16
    %v960 = vld [vmem:[%s959] ss:$8 sm:$0x3]
    %v962 = vperm.slane %v960, 1
    %964 = vmatpush.msra.mxu0 %v303
    %965 = vmatpush.msra.mxu0 %v301
    %966 = vmatpush.msra.mxu0 %v299
    %967 = vmatpush.msra.mxu0 %v297
    %968 = vmatpush.msra.mxu0 %v295
    %969 = vmatpush.msra.mxu0 %v293
    %970 = vmatpush.msra.mxu0 %v291
    %971 = vmatpush.msra.mxu0 %v289
    %972 = vmatpush.msra.mxu0 %v287
    %973 = vmatpush.msra.mxu0 %v285
    %974 = vmatpush.msra.mxu0 %v283
    %975 = vmatpush.msra.mxu0 %v281
    %976 = vmatpush.msra.mxu0 %v279
    %977 = vmatpush.msra.mxu0 %v277
    %978 = vmatpush.msra.mxu0 %v275
    %979 = vmatpush.msra.mxu0 %v273
    %980 = vmatmul.f32.gmra.mxu0 %v957
    %v981 = vpop.f32.mrf.mxu0
    %v982 = vadd.f32 %v962, %v981
    %983 = vdwg.mxu0
    %984 = vmatpush.msra.mxu0 %v335
    %985 = vmatpush.msra.mxu0 %v333
    %986 = vmatpush.msra.mxu0 %v331
    %987 = vmatpush.msra.mxu0 %v329
    %988 = vmatpush.msra.mxu0 %v327
    %989 = vmatpush.msra.mxu0 %v325
    %990 = vmatpush.msra.mxu0 %v323
    %991 = vmatpush.msra.mxu0 %v321
    %992 = vmatpush.msra.mxu0 %v319
    %993 = vmatpush.msra.mxu0 %v317
    %994 = vmatpush.msra.mxu0 %v315
    %995 = vmatpush.msra.mxu0 %v313
    %996 = vmatpush.msra.mxu0 %v311
    %997 = vmatpush.msra.mxu0 %v309
    %998 = vmatpush.msra.mxu0 %v307
    %999 = vmatpush.msra.mxu0 %v305
    %1000 = vmatmul.f32.gmra.mxu0 %v958
    %v1001 = vpop.f32.mrf.mxu0
    %v1002 = vadd.f32 %v982, %v1001
    %1003 = vdwg.mxu0
    %v1004 = vtanh.pop %v1002
    %v1005 = vld [vmem:[%s5] sm:$0xff]
    %v1006 = vld [vmem:[%s5 + $0x8] sm:$0xff]
    %v1007 = vld [vmem:[%s5 + $0x10] sm:$0xff]
    %v1008 = vld [vmem:[%s5 + $0x18] sm:$0xff]
    %v1009 = vld [vmem:[%s5 + $0x20] sm:$0xff]
    %v1010 = vld [vmem:[%s5 + $0x28] sm:$0xff]
    %v1011 = vld [vmem:[%s5 + $0x30] sm:$0xff]
    %v1012 = vld [vmem:[%s5 + $0x38] sm:$0xff]
    %v1013 = vld [vmem:[%s5 + $0x40] sm:$0xff]
    %v1014 = vld [vmem:[%s5 + $0x48] sm:$0xff]
    %v1015 = vld [vmem:[%s5 + $0x50] sm:$0xff]
    %v1016 = vld [vmem:[%s5 + $0x58] sm:$0xff]
    %v1017 = vld [vmem:[%s5 + $0x60] sm:$0xff]
    %v1018 = vld [vmem:[%s5 + $0x68] sm:$0xff]
    %v1019 = vld [vmem:[%s5 + $0x70] sm:$0xff]
    %v1020 = vld [vmem:[%s5 + $0x78] sm:$0xff]
    %v1021 = vld [vmem:[%s6] sm:$0x1]
    %1022 = vmatpush.msra.mxu0 %v1020
    %1023 = vmatpush.msra.mxu0 %v1019
    %1024 = vmatpush.msra.mxu0 %v1018
    %1025 = vmatpush.msra.mxu0 %v1017
    %1026 = vmatpush.msra.mxu0 %v1016
    %1027 = vmatpush.msra.mxu0 %v1015
    %1028 = vmatpush.msra.mxu0 %v1014
    %1029 = vmatpush.msra.mxu0 %v1013
    %1030 = vmatpush.msra.mxu0 %v1012
    %1031 = vmatpush.msra.mxu0 %v1011
    %1032 = vmatpush.msra.mxu0 %v1010
    %1033 = vmatpush.msra.mxu0 %v1009
    %1034 = vmatpush.msra.mxu0 %v1008
    %1035 = vmatpush.msra.mxu0 %v1007
    %1036 = vmatpush.msra.mxu0 %v1006
    %1037 = vmatpush.msra.mxu0 %v1005
    %1038 = vmatmul.f32.gmra.mxu0 %v1004
    %v1039 = vpop.f32.mrf.mxu0
    %v1040 = vadd.f32 %v1021, %v1039
    %1041 = vdwg.mxu0
    %v1043 = vrot.slane %v1040, 7
    %vm1045 = vcmask 1040384
    %v1046 = vsel %vm1045, %v1004, %v1043
    %1047 = vst [vmem:[%s7] sm:$0x3] %v1046
    // Predicated region
    $region38: #{_forward_impl.1} parent=1 // pred_check
      _
    $region39: #{_forward_impl.1} parent=1 // pred_check_branch
      %1049 = sbr.rel (0) target = $region41
    $region40: #{_forward_impl.1} parent=1 // pred_region
      _
    $region41: #{_forward_impl.1} parent=1 // pred_fallthru
      _
    // Predicated region
    $region42: #{_forward_impl.1} parent=1 // pred_check
      _
    $region43: #{_forward_impl.1} parent=1 // pred_check_branch
      %1051 = sbr.rel (0) target = $region45
    $region44: #{_forward_impl.1} parent=1 // pred_region
      _
    $region45: #{_forward_impl.1} parent=1 // pred_fallthru
      _
    %1052 = vsyncpa [#allocation4], 1
    %1053 = vsyncpa [#allocation6], 1

</llo_original>
